<compile_context>
chip_gen: v7x
topology: tpu7x:2x2x1
jax: 0.10.0
libtpu: 0.0.40
codegen_flags: <defaults>
</compile_context>

<pallas_src>
import functools

import jax
import jax.numpy as jnp
from jax.experimental import pallas as pl
from jax.experimental.pallas import tpu as pltpu


def _log_sigmoid(x):
    # numerically stable logsigmoid(x) = min(x, 0) - log1p(exp(-|x|))
    return jnp.minimum(x, 0.0) - jnp.log1p(jnp.exp(-jnp.abs(x)))


def _skipgram_kernel(batch, center_ref, others_ref, out_ref):
    """One batch tile per grid step.

    center_ref : (TB, D)        VMEM   center embeddings
    others_ref : (K+1, TB, D)   VMEM   term 0 = context (positive), 1..K = negatives
    out_ref    : (1, 8, 128)    VMEM   per-tile partial sum (broadcast scalar)
    """
    i = pl.program_id(0)
    tile_b, _ = center_ref.shape
    num_terms = others_ref.shape[0]

    c = center_ref[...].astype(jnp.float32)                      # (TB, D)

    # All dot products are VPU multiply + XLU lane reduce (no tiny MXU matvecs).
    total = jnp.zeros((tile_b, 1), jnp.float32)
    for t in range(num_terms):                                    # static unroll
        e = others_ref[t].astype(jnp.float32)                     # (TB, D)
        s = jnp.sum(e * c, axis=-1, keepdims=True)                # (TB, 1)
        # term 0 is the positive pair (+logsigmoid(s)); the rest are negatives.
        total = total + _log_sigmoid(s if t == 0 else -s)

    # Mask rows past the true batch size (batch was padded to a tile multiple).
    row = i * tile_b + jax.lax.broadcasted_iota(jnp.int32, (tile_b, 1), 0)
    total = jnp.where(row < batch, total, 0.0)

    # One cross-lane reduce per tile; write a lane-dense block (all 1024 slots
    # carry the same scalar, XLA reads [:, 0, 0]). No shared accumulator, so the
    # grid axis can be "parallel" (v7x megacore) without a race.
    out_ref[...] = jnp.full((1, 8, 128), jnp.sum(total), dtype=jnp.float32)


def _sublane_multiple(dtype):
    return {4: 8, 2: 16, 1: 32}.get(jnp.dtype(dtype).itemsize, 8)


def _vmem_capacity_bytes():
    try:
        info = pltpu.get_tpu_info()
        cap = int(getattr(info, "vmem_capacity_bytes", 0) or 0)
        if cap > 0:
            return cap
    except Exception:
        pass
    return 64 * 1024 * 1024  # conservative: v7x per-TensorCore VMEM


def _choose_tile_b(batch, num_terms, dim, dtype, target_tile_bytes):
    """Pick a batch tile: big enough to amortize ~0.35us/step, VMEM-friendly."""
    itemsize = jnp.dtype(dtype).itemsize
    mult = _sublane_multiple(dtype)
    per_row = (num_terms + 1) * dim * itemsize            # center + (K+1) terms
    tb = max(mult, (target_tile_bytes // per_row) // mult * mult)
    b_ceil = -(-batch // mult) * mult
    return int(min(tb, b_ceil))


def skipgram_loss_pallas(center_embeds, others_embeds, *, tile_b=None):
    """center_embeds: (B, D); others_embeds: (K+1, B, D) (context first, then negs)."""
    B, D = center_embeds.shape
    T, Bn, Dn = others_embeds.shape
    assert Bn == B and Dn == D
    assert center_embeds.dtype == others_embeds.dtype
    dtype = center_embeds.dtype
    itemsize = jnp.dtype(dtype).itemsize
    mult = _sublane_multiple(dtype)

    vmem_cap = _vmem_capacity_bytes()
    # ~cap/8 per (double-buffered) tile: 8 MiB on v7x (64 MiB VMEM), 16 MiB on
    # v5e/v6e (128 MiB VMEM); >=2 MiB floor keeps step overhead amortized.
    target_tile_bytes = max(2 * 1024 * 1024, min(16 * 1024 * 1024, vmem_cap // 8))

    if tile_b is None:
        tile_b = _choose_tile_b(B, T, D, dtype, target_tile_bytes)
    tile_b = max(mult, (int(tile_b) // mult) * mult)

    num_tiles = (B + tile_b - 1) // tile_b
    b_pad = num_tiles * tile_b
    if b_pad != B:
        pad = b_pad - B
        center_embeds = jnp.pad(center_embeds, ((0, pad), (0, 0)))
        others_embeds = jnp.pad(others_embeds, ((0, 0), (0, pad), (0, 0)))

    # Per-tile VMEM footprint (one buffer); BlockSpec double-buffers inputs.
    tile_bytes = (T + 1) * tile_b * D * itemsize
    headroom = 4 * 1024 * 1024
    need = 2 * tile_bytes + headroom
    assert need <= vmem_cap, (
        f"tile too large for VMEM: need {need} B, capacity {vmem_cap} B")
    vmem_limit = int(min(int(0.9 * vmem_cap), max(32 * 1024 * 1024, need)))

    cost = pl.CostEstimate(
        flops=2 * b_pad * T * D,
        transcendentals=2 * b_pad * T,
        bytes_accessed=itemsize * (b_pad * D + T * b_pad * D)
        + num_tiles * 8 * 128 * 4,
    )

    kernel = functools.partial(_skipgram_kernel, B)

    partials = pl.pallas_call(
        kernel,
        out_shape=jax.ShapeDtypeStruct((num_tiles, 8, 128), jnp.float32),
        grid=(num_tiles,),
        in_specs=[
            pl.BlockSpec((tile_b, D), lambda i: (i, 0)),
            pl.BlockSpec((T, tile_b, D), lambda i: (0, i, 0)),
        ],
        out_specs=pl.BlockSpec((1, 8, 128), lambda i: (i, 0, 0)),
        compiler_params=pltpu.CompilerParams(
            # No shared accumulator -> batch axis is safe to shard across
            # TensorCores (v7x megacore); no-op on single-TC v5e/v6e.
            dimension_semantics=("parallel",),
            vmem_limit_bytes=vmem_limit,
        ),
        cost_estimate=cost,
    )(center_embeds, others_embeds)

    # Tiny finalize in XLA: sum per-tile partials, negate, divide by true batch.
    return -jnp.sum(partials[:, 0, 0]) / jnp.float32(B)


def xavier_uniform(key, shape):
    fan_in, fan_out = shape[0], shape[1]
    bound = jnp.sqrt(6.0 / (fan_in + fan_out))
    return jax.random.uniform(key, shape, jnp.float32, minval=-bound, maxval=bound)


class SkipGramModelJax:
    """JAX/Pallas port of the PyTorch SkipGramModel (forward only)."""

    def __init__(self, vocab_size, embedding_dim, key, *,
                 tile_b=None, table_dtype=jnp.bfloat16):
        k1, k2 = jax.random.split(key)
        self.center_embeddings = xavier_uniform(
            k1, (vocab_size, embedding_dim)).astype(table_dtype)
        self.context_embeddings = xavier_uniform(
            k2, (vocab_size, embedding_dim)).astype(table_dtype)
        self.tile_b = tile_b

    def __call__(self, center_words, context_words, negative_words):
        # TODO(synk): fuse these data-dependent row gathers into the kernel
        # (scalar-prefetch ids + make_async_copy HBM row gathers / resident table).
        center_embeds = jnp.take(self.center_embeddings, center_words, axis=0)   # (B, D)
        # One gather for context + negatives, already in (K+1, B, D) layout so the
        # kernel sees a single well-packed (TB, D)-trailing-tile stream.
        ids = jnp.concatenate([context_words[None, :], negative_words.T], axis=0)  # (K+1, B)
        others_embeds = jnp.take(self.context_embeddings, ids, axis=0)             # (K+1, B, D)
        return skipgram_loss_pallas(center_embeds, others_embeds, tile_b=self.tile_b)


if __name__ == "__main__":
    vocab_size = 256
    embedding_dim = 128   # lane-aligned D: full 128-lane utilization
    batch = 20            # not a multiple of tile_b -> exercises in-kernel masking
    num_neg = 5
    tile_b = 16           # bf16 sublane multiple; grid=(2,) exercises pipelining

    key = jax.random.PRNGKey(0)
    k_model, k_c, k_ctx, k_neg = jax.random.split(key, 4)

    model = SkipGramModelJax(vocab_size, embedding_dim, k_model, tile_b=tile_b)

    center_words = jax.random.randint(k_c, (batch,), 0, vocab_size, dtype=jnp.int32)
    context_words = jax.random.randint(k_ctx, (batch,), 0, vocab_size, dtype=jnp.int32)
    negative_words = jax.random.randint(
        k_neg, (batch, num_neg), 0, vocab_size, dtype=jnp.int32
    )

    loss = model(center_words, context_words, negative_words)
    jax.block_until_ready(loss)

    # Pure-JAX reference check (matches the PyTorch forward semantics; same bf16
    # table values, upcast to f32 for the math like the kernel does).
    ce = jnp.take(model.center_embeddings, center_words, axis=0).astype(jnp.float32)
    xe = jnp.take(model.context_embeddings, context_words, axis=0).astype(jnp.float32)
    ne = jnp.take(model.context_embeddings, negative_words, axis=0).astype(jnp.float32)
    pos = jax.nn.log_sigmoid(jnp.sum(ce * xe, axis=1))
    neg = jnp.sum(jax.nn.log_sigmoid(-jnp.einsum("bkd,bd->bk", ne, ce)), axis=1)
    ref = -jnp.mean(pos + neg)
    assert jnp.allclose(loss, ref, rtol=1e-4, atol=1e-4), (loss, ref)

    print("KERNEL_OK")
</pallas_src>

<mosaic_0001>
module attributes {stable_mosaic.version = 11 : i64} {
  func.func @_skipgram_kernel(%arg0: i32, %arg1: memref<16x128xbf16, #tpu.memory_space<vmem>>, %arg2: memref<6x16x128xbf16, #tpu.memory_space<vmem>>, %arg3: memref<1x8x128xf32, #tpu.memory_space<vmem>>) attributes {dimension_semantics = [#tpu.dimension_semantics<parallel>], iteration_bounds = array<i64: 2>, scalar_prefetch = 0 : i64, scratch_operands = 0 : i64, tpu.core_type = #tpu.core_type<tc>, window_params = [{transform_indices = @transform_0, window_bounds = array<i64: 16, 128>}, {transform_indices = @transform_1, window_bounds = array<i64: 6, 16, 128>}, {transform_indices = @transform_2, window_bounds = array<i64: 1, 8, 128>}]} {
    %c0 = arith.constant 0 : index
    %c0_0 = arith.constant 0 : index
    %0 = vector.load %arg1[%c0, %c0_0] : memref<16x128xbf16, #tpu.memory_space<vmem>>, vector<16x128xbf16>
    %1 = arith.extf %0 : vector<16x128xbf16> to vector<16x128xf32>
    %cst = arith.constant 0.000000e+00 : f32
    %2 = vector.broadcast %cst : f32 to vector<16x1xf32>
    %c0_1 = arith.constant 0 : index
    %c0_2 = arith.constant 0 : index
    %c0_3 = arith.constant 0 : index
    %3 = vector.load %arg2[%c0_1, %c0_2, %c0_3] : memref<6x16x128xbf16, #tpu.memory_space<vmem>>, vector<1x16x128xbf16>
    %4 = vector.shape_cast %3 : vector<1x16x128xbf16> to vector<16x128xbf16>
    %5 = arith.extf %4 : vector<16x128xbf16> to vector<16x128xf32>
    %6 = arith.mulf %5, %1 : vector<16x128xf32>
    %cst_4 = arith.constant dense<0.000000e+00> : vector<16xf32>
    %7 = vector.multi_reduction <add>, %6, %cst_4 [1] : vector<16x128xf32> to vector<16xf32>
    %8 = vector.shape_cast %7 : vector<16xf32> to vector<16x1xf32>
    %cst_5 = arith.constant 0.000000e+00 : f32
    %9 = vector.broadcast %cst_5 : f32 to vector<16x1xf32>
    %10 = arith.minimumf %8, %9 : vector<16x1xf32>
    %11 = math.absf %8 : vector<16x1xf32>
    %cst_6 = arith.constant 0.000000e+00 : f32
    %12 = vector.broadcast %cst_6 : f32 to vector<16x1xf32>
    %13 = arith.subf %12, %11 : vector<16x1xf32>
    %14 = math.exp %13 : vector<16x1xf32>
    %15 = math.log1p %14 : vector<16x1xf32>
    %16 = arith.subf %10, %15 : vector<16x1xf32>
    %17 = arith.addf %2, %16 : vector<16x1xf32>
    %c1 = arith.constant 1 : index
    %c0_7 = arith.constant 0 : index
    %c0_8 = arith.constant 0 : index
    %18 = vector.load %arg2[%c1, %c0_7, %c0_8] : memref<6x16x128xbf16, #tpu.memory_space<vmem>>, vector<1x16x128xbf16>
    %19 = vector.shape_cast %18 : vector<1x16x128xbf16> to vector<16x128xbf16>
    %20 = arith.extf %19 : vector<16x128xbf16> to vector<16x128xf32>
    %21 = arith.mulf %20, %1 : vector<16x128xf32>
    %cst_9 = arith.constant dense<0.000000e+00> : vector<16xf32>
    %22 = vector.multi_reduction <add>, %21, %cst_9 [1] : vector<16x128xf32> to vector<16xf32>
    %23 = vector.shape_cast %22 : vector<16xf32> to vector<16x1xf32>
    %cst_10 = arith.constant 0.000000e+00 : f32
    %24 = vector.broadcast %cst_10 : f32 to vector<16x1xf32>
    %25 = arith.subf %24, %23 : vector<16x1xf32>
    %cst_11 = arith.constant 0.000000e+00 : f32
    %26 = vector.broadcast %cst_11 : f32 to vector<16x1xf32>
    %27 = arith.minimumf %25, %26 : vector<16x1xf32>
    %28 = math.absf %25 : vector<16x1xf32>
    %cst_12 = arith.constant 0.000000e+00 : f32
    %29 = vector.broadcast %cst_12 : f32 to vector<16x1xf32>
    %30 = arith.subf %29, %28 : vector<16x1xf32>
    %31 = math.exp %30 : vector<16x1xf32>
    %32 = math.log1p %31 : vector<16x1xf32>
    %33 = arith.subf %27, %32 : vector<16x1xf32>
    %34 = arith.addf %17, %33 : vector<16x1xf32>
    %c2 = arith.constant 2 : index
    %c0_13 = arith.constant 0 : index
    %c0_14 = arith.constant 0 : index
    %35 = vector.load %arg2[%c2, %c0_13, %c0_14] : memref<6x16x128xbf16, #tpu.memory_space<vmem>>, vector<1x16x128xbf16>
    %36 = vector.shape_cast %35 : vector<1x16x128xbf16> to vector<16x128xbf16>
    %37 = arith.extf %36 : vector<16x128xbf16> to vector<16x128xf32>
    %38 = arith.mulf %37, %1 : vector<16x128xf32>
    %cst_15 = arith.constant dense<0.000000e+00> : vector<16xf32>
    %39 = vector.multi_reduction <add>, %38, %cst_15 [1] : vector<16x128xf32> to vector<16xf32>
    %40 = vector.shape_cast %39 : vector<16xf32> to vector<16x1xf32>
    %cst_16 = arith.constant 0.000000e+00 : f32
    %41 = vector.broadcast %cst_16 : f32 to vector<16x1xf32>
    %42 = arith.subf %41, %40 : vector<16x1xf32>
    %cst_17 = arith.constant 0.000000e+00 : f32
    %43 = vector.broadcast %cst_17 : f32 to vector<16x1xf32>
    %44 = arith.minimumf %42, %43 : vector<16x1xf32>
    %45 = math.absf %42 : vector<16x1xf32>
    %cst_18 = arith.constant 0.000000e+00 : f32
    %46 = vector.broadcast %cst_18 : f32 to vector<16x1xf32>
    %47 = arith.subf %46, %45 : vector<16x1xf32>
    %48 = math.exp %47 : vector<16x1xf32>
    %49 = math.log1p %48 : vector<16x1xf32>
    %50 = arith.subf %44, %49 : vector<16x1xf32>
    %51 = arith.addf %34, %50 : vector<16x1xf32>
    %c3 = arith.constant 3 : index
    %c0_19 = arith.constant 0 : index
    %c0_20 = arith.constant 0 : index
    %52 = vector.load %arg2[%c3, %c0_19, %c0_20] : memref<6x16x128xbf16, #tpu.memory_space<vmem>>, vector<1x16x128xbf16>
    %53 = vector.shape_cast %52 : vector<1x16x128xbf16> to vector<16x128xbf16>
    %54 = arith.extf %53 : vector<16x128xbf16> to vector<16x128xf32>
    %55 = arith.mulf %54, %1 : vector<16x128xf32>
    %cst_21 = arith.constant dense<0.000000e+00> : vector<16xf32>
    %56 = vector.multi_reduction <add>, %55, %cst_21 [1] : vector<16x128xf32> to vector<16xf32>
    %57 = vector.shape_cast %56 : vector<16xf32> to vector<16x1xf32>
    %cst_22 = arith.constant 0.000000e+00 : f32
    %58 = vector.broadcast %cst_22 : f32 to vector<16x1xf32>
    %59 = arith.subf %58, %57 : vector<16x1xf32>
    %cst_23 = arith.constant 0.000000e+00 : f32
    %60 = vector.broadcast %cst_23 : f32 to vector<16x1xf32>
    %61 = arith.minimumf %59, %60 : vector<16x1xf32>
    %62 = math.absf %59 : vector<16x1xf32>
    %cst_24 = arith.constant 0.000000e+00 : f32
    %63 = vector.broadcast %cst_24 : f32 to vector<16x1xf32>
    %64 = arith.subf %63, %62 : vector<16x1xf32>
    %65 = math.exp %64 : vector<16x1xf32>
    %66 = math.log1p %65 : vector<16x1xf32>
    %67 = arith.subf %61, %66 : vector<16x1xf32>
    %68 = arith.addf %51, %67 : vector<16x1xf32>
    %c4 = arith.constant 4 : index
    %c0_25 = arith.constant 0 : index
    %c0_26 = arith.constant 0 : index
    %69 = vector.load %arg2[%c4, %c0_25, %c0_26] : memref<6x16x128xbf16, #tpu.memory_space<vmem>>, vector<1x16x128xbf16>
    %70 = vector.shape_cast %69 : vector<1x16x128xbf16> to vector<16x128xbf16>
    %71 = arith.extf %70 : vector<16x128xbf16> to vector<16x128xf32>
    %72 = arith.mulf %71, %1 : vector<16x128xf32>
    %cst_27 = arith.constant dense<0.000000e+00> : vector<16xf32>
    %73 = vector.multi_reduction <add>, %72, %cst_27 [1] : vector<16x128xf32> to vector<16xf32>
    %74 = vector.shape_cast %73 : vector<16xf32> to vector<16x1xf32>
    %cst_28 = arith.constant 0.000000e+00 : f32
    %75 = vector.broadcast %cst_28 : f32 to vector<16x1xf32>
    %76 = arith.subf %75, %74 : vector<16x1xf32>
    %cst_29 = arith.constant 0.000000e+00 : f32
    %77 = vector.broadcast %cst_29 : f32 to vector<16x1xf32>
    %78 = arith.minimumf %76, %77 : vector<16x1xf32>
    %79 = math.absf %76 : vector<16x1xf32>
    %cst_30 = arith.constant 0.000000e+00 : f32
    %80 = vector.broadcast %cst_30 : f32 to vector<16x1xf32>
    %81 = arith.subf %80, %79 : vector<16x1xf32>
    %82 = math.exp %81 : vector<16x1xf32>
    %83 = math.log1p %82 : vector<16x1xf32>
    %84 = arith.subf %78, %83 : vector<16x1xf32>
    %85 = arith.addf %68, %84 : vector<16x1xf32>
    %c5 = arith.constant 5 : index
    %c0_31 = arith.constant 0 : index
    %c0_32 = arith.constant 0 : index
    %86 = vector.load %arg2[%c5, %c0_31, %c0_32] : memref<6x16x128xbf16, #tpu.memory_space<vmem>>, vector<1x16x128xbf16>
    %87 = vector.shape_cast %86 : vector<1x16x128xbf16> to vector<16x128xbf16>
    %88 = arith.extf %87 : vector<16x128xbf16> to vector<16x128xf32>
    %89 = arith.mulf %88, %1 : vector<16x128xf32>
    %cst_33 = arith.constant dense<0.000000e+00> : vector<16xf32>
    %90 = vector.multi_reduction <add>, %89, %cst_33 [1] : vector<16x128xf32> to vector<16xf32>
    %91 = vector.shape_cast %90 : vector<16xf32> to vector<16x1xf32>
    %cst_34 = arith.constant 0.000000e+00 : f32
    %92 = vector.broadcast %cst_34 : f32 to vector<16x1xf32>
    %93 = arith.subf %92, %91 : vector<16x1xf32>
    %cst_35 = arith.constant 0.000000e+00 : f32
    %94 = vector.broadcast %cst_35 : f32 to vector<16x1xf32>
    %95 = arith.minimumf %93, %94 : vector<16x1xf32>
    %96 = math.absf %93 : vector<16x1xf32>
    %cst_36 = arith.constant 0.000000e+00 : f32
    %97 = vector.broadcast %cst_36 : f32 to vector<16x1xf32>
    %98 = arith.subf %97, %96 : vector<16x1xf32>
    %99 = math.exp %98 : vector<16x1xf32>
    %100 = math.log1p %99 : vector<16x1xf32>
    %101 = arith.subf %95, %100 : vector<16x1xf32>
    %102 = arith.addf %85, %101 : vector<16x1xf32>
    %c16_i32 = arith.constant 16 : i32
    %103 = arith.muli %arg0, %c16_i32 : i32
    %104 = tpu.iota {dimensions = array<i32: 0>} : vector<16x1xi32>
    %105 = vector.broadcast %103 : i32 to vector<16x1xi32>
    %106 = arith.addi %105, %104 : vector<16x1xi32>
    %c20_i32 = arith.constant 20 : i32
    %107 = vector.broadcast %c20_i32 : i32 to vector<16x1xi32>
    %108 = arith.cmpi slt, %106, %107 : vector<16x1xi32>
    %cst_37 = arith.constant 0.000000e+00 : f32
    %109 = vector.broadcast %cst_37 : f32 to vector<16x1xf32>
    %110 = arith.select %108, %102, %109 : vector<16x1xi1>, vector<16x1xf32>
    %111 = vector.shape_cast %110 : vector<16x1xf32> to vector<1x16x1xf32>
    %cst_38 = arith.constant dense<0.000000e+00> : vector<1xf32>
    %112 = vector.multi_reduction <add>, %111, %cst_38 [1, 2] : vector<1x16x1xf32> to vector<1xf32>
    %113 = vector.shape_cast %112 : vector<1xf32> to vector<1x1x1xf32>
    %114 = vector.extract %113[0, 0, 0] : f32 from vector<1x1x1xf32>
    %115 = vector.broadcast %114 : f32 to vector<1x8x128xf32>
    %c0_39 = arith.constant 0 : index
    %c0_40 = arith.constant 0 : index
    %c0_41 = arith.constant 0 : index
    %116 = vector.load %arg3[%c0_39, %c0_40, %c0_41] : memref<1x8x128xf32, #tpu.memory_space<vmem>>, vector<1x8x128xf32>
    tpu.vector_store %arg3[%c0_39, %c0_40, %c0_41], %115 {strides = array<i32>} : memref<1x8x128xf32, #tpu.memory_space<vmem>>, vector<1x8x128xf32>,
    return
  }
  func.func @transform_0(%arg0: i32) -> (i32, i32) {
    %c0_i32 = arith.constant 0 : i32
    %c0_i32_0 = arith.constant 0 : i32
    return %arg0, %c0_i32 : i32, i32
  }
  func.func @transform_1(%arg0: i32) -> (i32, i32, i32) {
    %c0_i32 = arith.constant 0 : i32
    %c0_i32_0 = arith.constant 0 : i32
    %c0_i32_1 = arith.constant 0 : i32
    return %c0_i32, %arg0, %c0_i32_0 : i32, i32, i32
  }
  func.func @transform_2(%arg0: i32) -> (i32, i32, i32) {
    %c0_i32 = arith.constant 0 : i32
    %c0_i32_0 = arith.constant 0 : i32
    %c0_i32_1 = arith.constant 0 : i32
    return %arg0, %c0_i32, %c0_i32_0 : i32, i32, i32
  }
}

</mosaic_0001>

<llo_original>
// kernel: tpu_custom_call.1
$region0: #{tpu_custom_call.1}
  #allocation0 [shape = 'u32[]', space=smem, size = 0x4, offset = 0x4, fixed_abs, tag = 'smem constant byte address 0x4 - core index']
  #allocation1 [shape = 'u32[144,128]{1,0:T(1,128)}', space=vmem, size = 0x12000, scoped, tag = 'internal scratch']
  #allocation8 [shape = 's32[]', space=sflag, size = 0x4, offset = 0, fixed_abs, tag = 'sflag constant byte address 0x0 - dummy sync flag']
  %s0 = inlined_call_operand.hbm [shape: bf16[32,128], index: 0, kind: input, shape index: {}]
  %s1 = inlined_call_operand.hbm [shape: bf16[6,32,128], index: 1, kind: input, shape index: {}]
  %s2 = inlined_call_operand.hbm [shape: f32[2,8,128], index: 2, kind: output, shape index: {}]
  %s3 = sld [smem:[#allocation0]]
  $region49: #{tpu_custom_call.1} parent=0
    _
  %s5 = ssub.s32 1, %s3
  %s6 = scalar_select 0, %s5, %s3
  $region1: #{tpu_custom_call.1} parent=0
    #allocation2 [shape = 'u8[8192]{0}', space=vmem, size = 0x2000, scoped, tag = 'input window, operand 0']
    #allocation3 [shape = 's32[2]{0}', space=sflag, size = 0x8, scoped, tag = 'scoped memory for tpu_custom_call.1']
    #allocation4 [shape = 's32[2]{0}', space=sflag, size = 0x8, scoped, tag = 'scoped memory for tpu_custom_call.1']
    #allocation5 [shape = 'u8[49152]{0}', space=vmem, size = 0xc000, scoped, tag = 'input window, operand 1']
    #allocation6 [shape = 's32[2]{0}', space=sflag, size = 0x8, scoped, tag = 'scoped memory for tpu_custom_call.1']
    #allocation7 [shape = 'u8[8192]{0}', space=vmem, size = 0x2000, scoped, tag = 'output window, operand 0']
    %7 = vsyncpa [#allocation3], 0
    %s8 = scalar_lea.sflag [#allocation3], 1
    %9 = vsyncpa %s8, 0
    %10 = vsyncpa [#allocation6], 0
    %s11 = scalar_lea.sflag [#allocation6], 1
    %12 = vsyncpa %s11, 0
    %13 = vsyncpa [#allocation4], 0
    %s14 = scalar_lea.sflag [#allocation4], 1
    %15 = vsyncpa %s14, 0
    loop: start=0, step=1, limit=4
    $region2: #{tpu_custom_call.1} parent=1 // loop_pre_header
      _
    $region3: #{tpu_custom_call.1} parent=1 // loop_header
      %s17 = sphi 0, %s21
      %p18 = scmp.ge.s32.totalorder %s17, 4
      %s27 = sphi 0, %s29
      %s30 = sphi 0, %s27
      %s31 = sphi 0, %s30
      %s47 = sphi 0, %s31
      %s53 = sphi 0, %s55
      %s56 = sphi 0, %s53
      %s57 = sphi 0, %s56
      %s73 = sphi 0, %s57
      %s79 = sphi 0, %s81
      %s82 = sphi 0, %s79
      %s83 = sphi 0, %s82
      %s99 = sphi 0, %s83
    $region4: #{tpu_custom_call.1} parent=1 // loop_header_branch
      %20 = sbr.rel (%p18) target = $region8
    $region5: #{tpu_custom_call.1} parent=1 // loop_body
      %s22 = ssub.s32 %s17, 1
      %s23 = ssub.s32 %s17, 2
      %s24 = sadd.s32 %s17, 1
      %s25 = ssub.s32 %s17, %s24
      %p26 = scmp.eq.s32.totalorder %s25, 0
      %s28 = sadd.s32 %s27, 1
      %s29 = scalar_select %p26, %s27, %s28
      %p32 = pneg %p26
      %p33 = scmp.eq.s32.totalorder %s17, 1
      %p34 = por %p32, %p33
      %p35 = scmp.ne.s32.totalorder %s27, %s30
      %p36 = scmp.eq.s32.totalorder %s17, 0
      %p37 = por %p35, %p36
      %p38 = scmp.ne.s32.totalorder %s27, %s30
      %p39 = scmp.eq.s32.totalorder %s22, 1
      %p40 = por %p38, %p39
      %p41 = scmp.ne.s32.totalorder %s30, %s31
      %p42 = scmp.eq.s32.totalorder %s22, 0
      %p43 = por %p41, %p42
      %p44 = scmp.ne.s32.totalorder %s30, %s31
      %p45 = scmp.eq.s32.totalorder %s23, 1
      %p46 = por %p44, %p45
      %p48 = scmp.ne.s32.totalorder %s31, %s47
      %p49 = scmp.eq.s32.totalorder %s23, 0
      %p50 = por %p48, %p49
      %s51 = ssub.s32 %s17, %s24
      %p52 = scmp.eq.s32.totalorder %s51, 0
      %s54 = sadd.s32 %s53, 1
      %s55 = scalar_select %p52, %s53, %s54
      %p58 = pneg %p52
      %p59 = scmp.eq.s32.totalorder %s17, 1
      %p60 = por %p58, %p59
      %p61 = scmp.ne.s32.totalorder %s53, %s56
      %p62 = scmp.eq.s32.totalorder %s17, 0
      %p63 = por %p61, %p62
      %p64 = scmp.ne.s32.totalorder %s53, %s56
      %p65 = scmp.eq.s32.totalorder %s22, 1
      %p66 = por %p64, %p65
      %p67 = scmp.ne.s32.totalorder %s56, %s57
      %p68 = scmp.eq.s32.totalorder %s22, 0
      %p69 = por %p67, %p68
      %p70 = scmp.ne.s32.totalorder %s56, %s57
      %p71 = scmp.eq.s32.totalorder %s23, 1
      %p72 = por %p70, %p71
      %p74 = scmp.ne.s32.totalorder %s57, %s73
      %p75 = scmp.eq.s32.totalorder %s23, 0
      %p76 = por %p74, %p75
      %s77 = ssub.s32 %s17, %s24
      %p78 = scmp.eq.s32.totalorder %s77, 0
      %s80 = sadd.s32 %s79, 1
      %s81 = scalar_select %p78, %s79, %s80
      %p84 = pneg %p78
      %p85 = scmp.eq.s32.totalorder %s17, 1
      %p86 = por %p84, %p85
      %p87 = scmp.ne.s32.totalorder %s79, %s82
      %p88 = scmp.eq.s32.totalorder %s17, 0
      %p89 = por %p87, %p88
      %p90 = scmp.ne.s32.totalorder %s79, %s82
      %p91 = scmp.eq.s32.totalorder %s22, 1
      %p92 = por %p90, %p91
      %p93 = scmp.ne.s32.totalorder %s82, %s83
      %p94 = scmp.eq.s32.totalorder %s22, 0
      %p95 = por %p93, %p94
      %p96 = scmp.ne.s32.totalorder %s82, %s83
      %p97 = scmp.eq.s32.totalorder %s23, 1
      %p98 = por %p96, %p97
      %p100 = scmp.ne.s32.totalorder %s83, %s99
      %p101 = scmp.eq.s32.totalorder %s23, 0
      %p102 = por %p100, %p101
      %p103 = scmp.le.s32.totalorder 1, %s17
      %p104 = scmp.lt.s32.totalorder %s17, 3
      %p105 = pnand %p103, %p104
      %p106 = pneg %p105
      // Predicated region
      $region9: #{tpu_custom_call.1} parent=5 // pred_check
        _
      $region10: #{tpu_custom_call.1} parent=5 // pred_check_branch
        %108 = sbr.rel (%p105) target = $region12
      $region11: #{tpu_custom_call.1} parent=5 // pred_region
        %s109 = ssub.s32 %s17, 1
      $region12: #{tpu_custom_call.1} parent=5 // pred_fallthru
        _
      %p110 = scmp.lt.s32.totalorder %s17, 2
      // Predicated region
      $region13: #{tpu_custom_call.1} parent=5 // pred_check
        %p111 = pneg %p110
      $region14: #{tpu_custom_call.1} parent=5 // pred_check_branch
        %113 = sbr.rel (%p111) target = $region16
      $region15: #{tpu_custom_call.1} parent=5 // pred_region
        // Predicated region
        $region17: #{tpu_custom_call.1} parent=15 // pred_check
          %p114 = pneg %p37
        $region18: #{tpu_custom_call.1} parent=15 // pred_check_branch
          %116 = sbr.rel (%p114) target = $region20
        $region19: #{tpu_custom_call.1} parent=15 // pred_region
          %s117 = sand.u32 %s27, 1
          %s118 = scalar_lea.sflag [#allocation3], %s117
          %s119 = sand.u32 %s27, 1
          %s120 = smul.addr %s119, 8
          %s121 = scalar_lea.vmem [#allocation2], %s120
          %s122 = smul.u32 2, %s17
          %s124 = ssub.s32 128, 128
          %125 = vsyncadd %s118, %s124
          %s126 = smul.addr %s122, 64
          %s127 = scalar_lea.hbm %s0, %s126
          %s128 = sshll.u32 %s121, 4
          %s129 = int_to_ptr.vmem [resolvable:$true] %s128
          %134 = dma.hbm_to_vmem [thread:$0]  %s127, 128, %s129, %s118, 64, 64, 4
        $region20: #{tpu_custom_call.1} parent=15 // pred_fallthru
          _
        // Predicated region
        $region21: #{tpu_custom_call.1} parent=15 // pred_check
          %p135 = pneg %p63
        $region22: #{tpu_custom_call.1} parent=15 // pred_check_branch
          %137 = sbr.rel (%p135) target = $region24
        $region23: #{tpu_custom_call.1} parent=15 // pred_region
          #allocation9 [shape = 'u32[6]{0}', space=smem, size = 0x18, scoped, tag = 'DMA stride descriptor']
          %s138 = sand.u32 %s53, 1
          %s139 = scalar_lea.sflag [#allocation6], %s138
          %s140 = sand.u32 %s53, 1
          %s141 = smul.addr %s140, 48
          %s142 = scalar_lea.vmem [#allocation5], %s141
          %s143 = smul.u32 2, %s17
          %s145 = ssub.s32 768, 768
          %146 = vsyncadd %s139, %s145
          %s147 = smul.addr %s143, 64
          %s148 = scalar_lea.hbm %s1, %s147
          %s150 = sshll.u32 1, 14
          %s151 = sxor.u32 4294967295, %s150
          %s153 = sld [smem:[#allocation0]]
          %s154 = sadd.s32 2, %s153
          %s156 = sshll.u32 7, 26
          %s157 = sxor.u32 4294967295, %s156
          %s158 = sand.u32 0, %s157
          %s159 = sshll.u32 %s154, 26
          %s160 = sor.u32 %s158, %s159
          %s161 = sshll.u32 %s142, 4
          %s162 = int_to_ptr.vmem [resolvable:$true] %s161
          %168 = sst [smem:[#allocation9]] 256
          %s169 = scalar_lea.smem [#allocation9], 1
          %170 = sst [smem:[%s169]] 128
          %s171 = scalar_lea.smem [#allocation9], 2
          %172 = sst [smem:[%s171]] 2
          %s173 = scalar_lea.smem [#allocation9], 3
          %174 = sst [smem:[%s173]] 64
          %s175 = scalar_lea.smem [#allocation9], 4
          %176 = sst [smem:[%s175]] 64
          %s177 = scalar_lea.smem [#allocation9], 5
          %178 = sst [smem:[%s177]] 4
          %180 = dma.general %s148, 768, %s162, %s139, [#allocation8], [#allocation9], %s160, 0
        $region24: #{tpu_custom_call.1} parent=15 // pred_fallthru
          _
      $region16: #{tpu_custom_call.1} parent=5 // pred_fallthru
        _
      %p181 = scmp.le.s32.totalorder 1, %s17
      %p182 = scmp.lt.s32.totalorder %s17, 3
      %p183 = pnand %p181, %p182
      %p184 = pneg %p183
      // Predicated region
      $region25: #{tpu_custom_call.1} parent=5 // pred_check
        _
      $region26: #{tpu_custom_call.1} parent=5 // pred_check_branch
        %186 = sbr.rel (%p183) target = $region28
      $region27: #{tpu_custom_call.1} parent=5 // pred_region
        %s187 = ssub.s32 %s17, 1
        %s188 = sand.u32 %s30, 1
        %s189 = scalar_lea.sflag [#allocation3], %s188
        %s190 = sand.u32 %s30, 1
        %s191 = smul.addr %s190, 8
        %s192 = scalar_lea.vmem [#allocation2], %s191
        // Predicated region
        $region29: #{tpu_custom_call.1} parent=27 // pred_check
          %p193 = pneg %p43
        $region30: #{tpu_custom_call.1} parent=27 // pred_check_branch
          %195 = sbr.rel (%p193) target = $region32
        $region31: #{tpu_custom_call.1} parent=27 // pred_region
          %196 = dma.done %s189, 128
        $region32: #{tpu_custom_call.1} parent=27 // pred_fallthru
          _
        %s197 = sand.u32 %s56, 1
        %s198 = scalar_lea.sflag [#allocation6], %s197
        %s199 = sand.u32 %s56, 1
        %s200 = smul.addr %s199, 48
        %s201 = scalar_lea.vmem [#allocation5], %s200
        // Predicated region
        $region33: #{tpu_custom_call.1} parent=27 // pred_check
          %p202 = pneg %p69
        $region34: #{tpu_custom_call.1} parent=27 // pred_check_branch
          %204 = sbr.rel (%p202) target = $region36
        $region35: #{tpu_custom_call.1} parent=27 // pred_region
          %205 = dma.done %s198, 768
        $region36: #{tpu_custom_call.1} parent=27 // pred_fallthru
          _
        %s206 = sand.u32 %s30, 1
        %s207 = scalar_lea.sflag [#allocation3], %s206
        %s208 = sand.u32 %s30, 1
        %s209 = smul.addr %s208, 8
        %s210 = scalar_lea.vmem [#allocation2], %s209
        %p211 = pneg %p43
        %p212 = pneg %p40
        %s213 = sand.u32 %s56, 1
        %s214 = scalar_lea.sflag [#allocation6], %s213
        %s215 = sand.u32 %s56, 1
        %s216 = smul.addr %s215, 48
        %s217 = scalar_lea.vmem [#allocation5], %s216
        %p218 = pneg %p69
        %p219 = pneg %p66
        %p220 = pneg %p95
        %p221 = pneg %p92
        %s222 = sand.u32 %s82, 1
        %s223 = scalar_lea.sflag [#allocation4], %s222
        %s224 = sand.u32 %s82, 1
        %s225 = smul.addr %s224, 8
        %s226 = scalar_lea.vmem [#allocation7], %s225
        %s227 = smul.u32 2, %s22
        %s228 = smul.u32 2, %s22
        %v229 = vld [vmem:[%s192] sm:$0xf]
        %v230 = vld [vmem:[%s192 + $0x4] sm:$0xf]
        %v231 = vunpack.c.l.bf16 %v229
        %v232 = vunpack.c.l.bf16 %v230
        %v233 = vld [vmem:[%s201] sm:$0xf]
        %v234 = vld [vmem:[%s201 + $0x4] sm:$0xf]
        %v235 = vunpack.c.l.bf16 %v233
        %v236 = vunpack.c.l.bf16 %v234
        %v237 = vmul.f32 %v235, %v231
        %v238 = vmul.f32 %v236, %v232
        %239 = vadd.xlane.f32.xlu0 %v237
        %v240 = vpop.xlane.xlu0 %239
        %241 = vadd.xlane.f32.xlu0 %v238
        %v242 = vpop.xlane.xlu0 %241
        %v243 = vmin.f32 %v240, 0.0
        %v244 = vmin.f32 %v242, 0.0
        %v245 = vand.u32 2147483647, %v240
        %v246 = vand.u32 2147483647, %v242
        %v247 = vsub.f32 0.0, %v245
        %v248 = vsub.f32 0.0, %v246
        %v249 = vmul.f32 %v247, 1.442695
        %v250 = vpow.pop %v249
        %v251 = vmul.f32 %v248, 1.442695
        %v252 = vpow.pop %v251
        %v253 = vadd.f32 %v250, 1.0
        %v254 = vlog2.pop %v253
        %v255 = vmul.f32 %v254, 0.6931472
        %v256 = vmul.f32 -0.5, %v250
        %v257 = vadd.f32 %v256, 1.0
        %v258 = vmul.f32 %v257, %v250
        %v259 = vand.u32 2147483647, %v250
        %vm260 = vcmp.lt.f32.partialorder %v259, 0.0004427343
        %v261 = vsel %vm260, %v258, %v255
        %v262 = vadd.f32 %v252, 1.0
        %v263 = vlog2.pop %v262
        %v264 = vmul.f32 %v263, 0.6931472
        %v265 = vmul.f32 -0.5, %v252
        %v266 = vadd.f32 %v265, 1.0
        %v267 = vmul.f32 %v266, %v252
        %v268 = vand.u32 2147483647, %v252
        %vm269 = vcmp.lt.f32.partialorder %v268, 0.0004427343
        %v270 = vsel %vm269, %v267, %v264
        %v271 = vsub.f32 %v243, %v261
        %v272 = vsub.f32 %v244, %v270
        %v273 = vadd.f32 %v271, 0.0
        %v274 = vadd.f32 %v272, 0.0
        %s275 = scalar_lea.vmem %s201, 8 [#allocation5]
        %v276 = vld [vmem:[%s275] sm:$0xf]
        %v277 = vld [vmem:[%s275 + $0x4] sm:$0xf]
        %v278 = vunpack.c.l.bf16 %v276
        %v279 = vunpack.c.l.bf16 %v277
        %v280 = vmul.f32 %v278, %v231
        %v281 = vmul.f32 %v279, %v232
        %282 = vadd.xlane.f32.xlu0 %v280
        %v283 = vpop.xlane.xlu0 %282
        %284 = vadd.xlane.f32.xlu0 %v281
        %v285 = vpop.xlane.xlu0 %284
        %v286 = vsub.f32 0.0, %v283
        %v287 = vsub.f32 0.0, %v285
        %v288 = vmin.f32 %v286, 0.0
        %v289 = vmin.f32 %v287, 0.0
        %v290 = vand.u32 2147483647, %v286
        %v291 = vand.u32 2147483647, %v287
        %v292 = vsub.f32 0.0, %v290
        %v293 = vsub.f32 0.0, %v291
        %v294 = vmul.f32 %v292, 1.442695
        %v295 = vpow.pop %v294
        %v296 = vmul.f32 %v293, 1.442695
        %v297 = vpow.pop %v296
        %v298 = vadd.f32 %v295, 1.0
        %v299 = vlog2.pop %v298
        %v300 = vmul.f32 %v299, 0.6931472
        %v301 = vmul.f32 -0.5, %v295
        %v302 = vadd.f32 %v301, 1.0
        %v303 = vmul.f32 %v302, %v295
        %v304 = vand.u32 2147483647, %v295
        %vm305 = vcmp.lt.f32.partialorder %v304, 0.0004427343
        %v306 = vsel %vm305, %v303, %v300
        %v307 = vadd.f32 %v297, 1.0
        %v308 = vlog2.pop %v307
        %v309 = vmul.f32 %v308, 0.6931472
        %v310 = vmul.f32 -0.5, %v297
        %v311 = vadd.f32 %v310, 1.0
        %v312 = vmul.f32 %v311, %v297
        %v313 = vand.u32 2147483647, %v297
        %vm314 = vcmp.lt.f32.partialorder %v313, 0.0004427343
        %v315 = vsel %vm314, %v312, %v309
        %v316 = vsub.f32 %v288, %v306
        %v317 = vsub.f32 %v289, %v315
        %v318 = vadd.f32 %v273, %v316
        %v319 = vadd.f32 %v274, %v317
        %s320 = scalar_lea.vmem %s201, 16 [#allocation5]
        %v321 = vld [vmem:[%s320] sm:$0xf]
        %v322 = vld [vmem:[%s320 + $0x4] sm:$0xf]
        %v323 = vunpack.c.l.bf16 %v321
        %v324 = vunpack.c.l.bf16 %v322
        %v325 = vmul.f32 %v323, %v231
        %v326 = vmul.f32 %v324, %v232
        %327 = vadd.xlane.f32.xlu0 %v325
        %v328 = vpop.xlane.xlu0 %327
        %329 = vadd.xlane.f32.xlu0 %v326
        %v330 = vpop.xlane.xlu0 %329
        %v331 = vsub.f32 0.0, %v328
        %v332 = vsub.f32 0.0, %v330
        %v333 = vmin.f32 %v331, 0.0
        %v334 = vmin.f32 %v332, 0.0
        %v335 = vand.u32 2147483647, %v331
        %v336 = vand.u32 2147483647, %v332
        %v337 = vsub.f32 0.0, %v335
        %v338 = vsub.f32 0.0, %v336
        %v339 = vmul.f32 %v337, 1.442695
        %v340 = vpow.pop %v339
        %v341 = vmul.f32 %v338, 1.442695
        %v342 = vpow.pop %v341
        %v343 = vadd.f32 %v340, 1.0
        %v344 = vlog2.pop %v343
        %v345 = vmul.f32 %v344, 0.6931472
        %v346 = vmul.f32 -0.5, %v340
        %v347 = vadd.f32 %v346, 1.0
        %v348 = vmul.f32 %v347, %v340
        %v349 = vand.u32 2147483647, %v340
        %vm350 = vcmp.lt.f32.partialorder %v349, 0.0004427343
        %v351 = vsel %vm350, %v348, %v345
        %v352 = vadd.f32 %v342, 1.0
        %v353 = vlog2.pop %v352
        %v354 = vmul.f32 %v353, 0.6931472
        %v355 = vmul.f32 -0.5, %v342
        %v356 = vadd.f32 %v355, 1.0
        %v357 = vmul.f32 %v356, %v342
        %v358 = vand.u32 2147483647, %v342
        %vm359 = vcmp.lt.f32.partialorder %v358, 0.0004427343
        %v360 = vsel %vm359, %v357, %v354
        %v361 = vsub.f32 %v333, %v351
        %v362 = vsub.f32 %v334, %v360
        %v363 = vadd.f32 %v318, %v361
        %v364 = vadd.f32 %v319, %v362
        %s365 = scalar_lea.vmem %s201, 24 [#allocation5]
        %v366 = vld [vmem:[%s365] sm:$0xf]
        %v367 = vld [vmem:[%s365 + $0x4] sm:$0xf]
        %v368 = vunpack.c.l.bf16 %v366
        %v369 = vunpack.c.l.bf16 %v367
        %v370 = vmul.f32 %v368, %v231
        %v371 = vmul.f32 %v369, %v232
        %372 = vadd.xlane.f32.xlu0 %v370
        %v373 = vpop.xlane.xlu0 %372
        %374 = vadd.xlane.f32.xlu0 %v371
        %v375 = vpop.xlane.xlu0 %374
        %v376 = vsub.f32 0.0, %v373
        %v377 = vsub.f32 0.0, %v375
        %v378 = vmin.f32 %v376, 0.0
        %v379 = vmin.f32 %v377, 0.0
        %v380 = vand.u32 2147483647, %v376
        %v381 = vand.u32 2147483647, %v377
        %v382 = vsub.f32 0.0, %v380
        %v383 = vsub.f32 0.0, %v381
        %v384 = vmul.f32 %v382, 1.442695
        %v385 = vpow.pop %v384
        %v386 = vmul.f32 %v383, 1.442695
        %v387 = vpow.pop %v386
        %v388 = vadd.f32 %v385, 1.0
        %v389 = vlog2.pop %v388
        %v390 = vmul.f32 %v389, 0.6931472
        %v391 = vmul.f32 -0.5, %v385
        %v392 = vadd.f32 %v391, 1.0
        %v393 = vmul.f32 %v392, %v385
        %v394 = vand.u32 2147483647, %v385
        %vm395 = vcmp.lt.f32.partialorder %v394, 0.0004427343
        %v396 = vsel %vm395, %v393, %v390
        %v397 = vadd.f32 %v387, 1.0
        %v398 = vlog2.pop %v397
        %v399 = vmul.f32 %v398, 0.6931472
        %v400 = vmul.f32 -0.5, %v387
        %v401 = vadd.f32 %v400, 1.0
        %v402 = vmul.f32 %v401, %v387
        %v403 = vand.u32 2147483647, %v387
        %vm404 = vcmp.lt.f32.partialorder %v403, 0.0004427343
        %v405 = vsel %vm404, %v402, %v399
        %v406 = vsub.f32 %v378, %v396
        %v407 = vsub.f32 %v379, %v405
        %v408 = vadd.f32 %v363, %v406
        %v409 = vadd.f32 %v364, %v407
        %s410 = scalar_lea.vmem %s201, 32 [#allocation5]
        %v411 = vld [vmem:[%s410] sm:$0xf]
        %v412 = vld [vmem:[%s410 + $0x4] sm:$0xf]
        %v413 = vunpack.c.l.bf16 %v411
        %v414 = vunpack.c.l.bf16 %v412
        %v415 = vmul.f32 %v413, %v231
        %v416 = vmul.f32 %v414, %v232
        %417 = vadd.xlane.f32.xlu0 %v415
        %v418 = vpop.xlane.xlu0 %417
        %419 = vadd.xlane.f32.xlu0 %v416
        %v420 = vpop.xlane.xlu0 %419
        %v421 = vsub.f32 0.0, %v418
        %v422 = vsub.f32 0.0, %v420
        %v423 = vmin.f32 %v421, 0.0
        %v424 = vmin.f32 %v422, 0.0
        %v425 = vand.u32 2147483647, %v421
        %v426 = vand.u32 2147483647, %v422
        %v427 = vsub.f32 0.0, %v425
        %v428 = vsub.f32 0.0, %v426
        %v429 = vmul.f32 %v427, 1.442695
        %v430 = vpow.pop %v429
        %v431 = vmul.f32 %v428, 1.442695
        %v432 = vpow.pop %v431
        %v433 = vadd.f32 %v430, 1.0
        %v434 = vlog2.pop %v433
        %v435 = vmul.f32 %v434, 0.6931472
        %v436 = vmul.f32 -0.5, %v430
        %v437 = vadd.f32 %v436, 1.0
        %v438 = vmul.f32 %v437, %v430
        %v439 = vand.u32 2147483647, %v430
        %vm440 = vcmp.lt.f32.partialorder %v439, 0.0004427343
        %v441 = vsel %vm440, %v438, %v435
        %v442 = vadd.f32 %v432, 1.0
        %v443 = vlog2.pop %v442
        %v444 = vmul.f32 %v443, 0.6931472
        %v445 = vmul.f32 -0.5, %v432
        %v446 = vadd.f32 %v445, 1.0
        %v447 = vmul.f32 %v446, %v432
        %v448 = vand.u32 2147483647, %v432
        %vm449 = vcmp.lt.f32.partialorder %v448, 0.0004427343
        %v450 = vsel %vm449, %v447, %v444
        %v451 = vsub.f32 %v423, %v441
        %v452 = vsub.f32 %v424, %v450
        %v453 = vadd.f32 %v408, %v451
        %v454 = vadd.f32 %v409, %v452
        %s455 = scalar_lea.vmem %s201, 40 [#allocation5]
        %v456 = vld [vmem:[%s455] sm:$0xf]
        %v457 = vld [vmem:[%s455 + $0x4] sm:$0xf]
        %v458 = vunpack.c.l.bf16 %v456
        %v459 = vunpack.c.l.bf16 %v457
        %v460 = vmul.f32 %v458, %v231
        %v461 = vmul.f32 %v459, %v232
        %462 = vadd.xlane.f32.xlu0 %v460
        %v463 = vpop.xlane.xlu0 %462
        %464 = vadd.xlane.f32.xlu0 %v461
        %v465 = vpop.xlane.xlu0 %464
        %v466 = vsub.f32 0.0, %v463
        %v467 = vsub.f32 0.0, %v465
        %v468 = vmin.f32 %v466, 0.0
        %v469 = vmin.f32 %v467, 0.0
        %v470 = vand.u32 2147483647, %v466
        %v471 = vand.u32 2147483647, %v467
        %v472 = vsub.f32 0.0, %v470
        %v473 = vsub.f32 0.0, %v471
        %v474 = vmul.f32 %v472, 1.442695
        %v475 = vpow.pop %v474
        %v476 = vmul.f32 %v473, 1.442695
        %v477 = vpow.pop %v476
        %v478 = vadd.f32 %v475, 1.0
        %v479 = vlog2.pop %v478
        %v480 = vmul.f32 %v479, 0.6931472
        %v481 = vmul.f32 -0.5, %v475
        %v482 = vadd.f32 %v481, 1.0
        %v483 = vmul.f32 %v482, %v475
        %v484 = vand.u32 2147483647, %v475
        %vm485 = vcmp.lt.f32.partialorder %v484, 0.0004427343
        %v486 = vsel %vm485, %v483, %v480
        %v487 = vadd.f32 %v477, 1.0
        %v488 = vlog2.pop %v487
        %v489 = vmul.f32 %v488, 0.6931472
        %v490 = vmul.f32 -0.5, %v477
        %v491 = vadd.f32 %v490, 1.0
        %v492 = vmul.f32 %v491, %v477
        %v493 = vand.u32 2147483647, %v477
        %vm494 = vcmp.lt.f32.partialorder %v493, 0.0004427343
        %v495 = vsel %vm494, %v492, %v489
        %v496 = vsub.f32 %v468, %v486
        %v497 = vsub.f32 %v469, %v495
        %v498 = vadd.f32 %v453, %v496
        %v499 = vadd.f32 %v454, %v497
        %s500 = smul.u32 %s22, 16
        %v501 = vlaneseq
        %v502 = vshrl.u32 %v501, 7
        %v503 = vadd.s32 %v502, 8
        %v504 = vstv %s500
        %v505 = vadd.s32 %v504, %v502
        %v506 = vadd.s32 %v504, %v503
        %vm507 = vcmp.lt.s32.totalorder %v505, 20
        %vm508 = vcmp.lt.s32.totalorder %v506, 20
        %v509 = vsel %vm507, %v498, 0.0
        %v510 = vsel %vm508, %v499, 0.0
        %vm511 = vcmask 7168
        %v512 = vsel %vm511, %v509, 0.0
        %v513 = vsel %vm511, %v510, 0.0
        %v514 = vadd.f32 %v512, %v513
        %515 = vadd.xlane.f32.xlu0 %v514
        %v516 = vpop.xlane.xlu0 %515
        %v517 = vrot.slane %v516, 4
        %v518 = vadd.f32 %v516, %v517
        %v519 = vrot.slane %v518, 2
        %v520 = vadd.f32 %v518, %v519
        %v521 = vrot.slane %v520, 1
        %v522 = vadd.f32 %v520, %v521
        %s523 = vtos %v522
        %v524 = vstv %s523
        %525 = vst [vmem:[%s226] sm:$0xff] %v524
        %s526 = sand.u32 %s82, 1
        %s527 = scalar_lea.sflag [#allocation4], %s526
        %s528 = sand.u32 %s82, 1
        %s529 = smul.addr %s528, 8
        %s530 = scalar_lea.vmem [#allocation7], %s529
        // Predicated region
        $region37: #{tpu_custom_call.1} parent=27 // pred_check
          %p531 = pneg %p92
        $region38: #{tpu_custom_call.1} parent=27 // pred_check_branch
          %533 = sbr.rel (%p531) target = $region40
        $region39: #{tpu_custom_call.1} parent=27 // pred_region
          %s535 = ssub.s32 128, 128
          %536 = vsyncadd %s527, %s535
          %s537 = smul.addr %s22, 128
          %s538 = scalar_lea.hbm %s2, %s537
          %s540 = sshll.u32 %s530, 4
          %s541 = int_to_ptr.vmem [resolvable:$true] %s540
          %543 = dma.vmem_to_hbm [thread:$0]  %s541, 128, %s538, %s527
        $region40: #{tpu_custom_call.1} parent=27 // pred_fallthru
          _
      $region28: #{tpu_custom_call.1} parent=5 // pred_fallthru
        _
      %p544 = scmp.le.s32.totalorder 2, %s17
      // Predicated region
      $region41: #{tpu_custom_call.1} parent=5 // pred_check
        %p545 = pneg %p544
      $region42: #{tpu_custom_call.1} parent=5 // pred_check_branch
        %547 = sbr.rel (%p545) target = $region44
      $region43: #{tpu_custom_call.1} parent=5 // pred_region
        %s548 = ssub.s32 %s17, 2
        // Predicated region
        $region45: #{tpu_custom_call.1} parent=43 // pred_check
          %p549 = pneg %p98
        $region46: #{tpu_custom_call.1} parent=43 // pred_check_branch
          %551 = sbr.rel (%p549) target = $region48
        $region47: #{tpu_custom_call.1} parent=43 // pred_region
          %s552 = sand.u32 %s83, 1
          %s553 = scalar_lea.sflag [#allocation4], %s552
          %s554 = sand.u32 %s83, 1
          %s555 = smul.addr %s554, 8
          %s556 = scalar_lea.vmem [#allocation7], %s555
          %557 = dma.done %s553, 128
        $region48: #{tpu_custom_call.1} parent=43 // pred_fallthru
          _
      $region44: #{tpu_custom_call.1} parent=5 // pred_fallthru
        _
    $region6: #{tpu_custom_call.1} parent=1 // loop_footer
      %s21 = sadd.s32 1, %s17
    $region7: #{tpu_custom_call.1} parent=1 // loop_footer_branch
      %16 = sbr.rel target = $region3
    $region8: #{tpu_custom_call.1} parent=1 // loop_exit
      _
    %558 = vsyncpa [#allocation3], 1
    %s559 = scalar_lea.sflag [#allocation3], 1
    %560 = vsyncpa %s559, 1
    %561 = vsyncpa [#allocation6], 1
    %s562 = scalar_lea.sflag [#allocation6], 1
    %563 = vsyncpa %s562, 1
    %564 = vsyncpa [#allocation4], 1
    %s565 = scalar_lea.sflag [#allocation4], 1
    %566 = vsyncpa %s565, 1

</llo_original>
